<compile_context>
chip_gen: v5e
topology: v5e:2x2
jax: 0.10.0
libtpu: 0.0.40
codegen_flags: <defaults>
</compile_context>

<pallas_src>
import jax
import jax.numpy as jnp
from jax.experimental import pallas as pl
from jax.experimental.pallas import tpu as pltpu


def _round_up(n, m):
    return ((n + m - 1) // m) * m


def _classifier_kernel(x_ref, w1_ref, b1_ref, w2_ref, b2_ref, o_ref):
    n_out = o_ref.shape[-1]
    # fc1 (+ folded bn1): cast x to bf16 in-kernel, MXU with f32 accumulation.
    x = x_ref[...].astype(jnp.bfloat16)
    h = jnp.dot(x, w1_ref[...], preferred_element_type=jnp.float32)
    h = jnp.maximum(h + b1_ref[...], 0.0)            # bias + ReLU in f32 (VPU)
    # dropout1: identity (eval mode)
    # fc2 (+ folded bn2)
    z = jnp.dot(h.astype(jnp.bfloat16), w2_ref[...],
                preferred_element_type=jnp.float32)
    z = jnp.maximum(z + b2_ref[...], 0.0)
    # dropout2: identity (eval mode)
    o_ref[...] = z[:, :n_out]                        # only real columns hit HBM


def classifier_forward(x, folded_params, out_features, *, block_b=2048):
    """x: (B, in_features) float32 -> (B, out_features) float32 (eval mode)."""
    w1, b1, w2, b2 = folded_params                   # BN-folded, lane-padded
    B, f_in = x.shape
    h_pad = w1.shape[1]
    o_pad = w2.shape[1]

    # >= 2 grid steps so the "parallel" batch axis can shard across both v7x
    # TensorCores; tb is a multiple of 16 (bf16-safe), capped at block_b.
    n_steps = max(2, pl.cdiv(B, block_b))
    tb = min(block_b, _round_up(pl.cdiv(B, n_steps), 16))
    b_pad = _round_up(B, tb)
    if b_pad != B:                                   # pad only the tail tile
        x = jnp.pad(x, ((0, b_pad - B), (0, 0)))

    out = pl.pallas_call(
        _classifier_kernel,
        out_shape=jax.ShapeDtypeStruct((b_pad, out_features), jnp.float32),
        grid=(b_pad // tb,),
        in_specs=[
            pl.BlockSpec((tb, f_in), lambda i: (i, 0)),      # x: streamed f32
            pl.BlockSpec((f_in, h_pad), lambda i: (0, 0)),   # w1: resident
            pl.BlockSpec((1, h_pad), lambda i: (0, 0)),      # b1: resident
            pl.BlockSpec((h_pad, o_pad), lambda i: (0, 0)),  # w2: resident
            pl.BlockSpec((1, o_pad), lambda i: (0, 0)),      # b2: resident
        ],
        out_specs=pl.BlockSpec((tb, out_features), lambda i: (i, 0)),
        compiler_params=pltpu.CompilerParams(
            dimension_semantics=("parallel",)),      # shard batch over 2 TCs
    )(x, w1, b1, w2, b2)
    return out if b_pad == B else out[:B]


def init_raw_params(key, in_features, out_features, hidden=32):
    """PyTorch-style init; linear weights stored transposed as (fan_in, fan_out)."""
    k1, k2, k3, k4 = jax.random.split(key, 4)

    bound1 = 1.0 / jnp.sqrt(jnp.float32(in_features))
    w1 = jax.random.uniform(k1, (in_features, hidden), jnp.float32, -bound1, bound1)
    b1 = jax.random.uniform(k2, (hidden,), jnp.float32, -bound1, bound1)

    bound2 = 1.0 / jnp.sqrt(jnp.float32(hidden))
    w2 = jax.random.uniform(k3, (hidden, out_features), jnp.float32, -bound2, bound2)
    b2 = jax.random.uniform(k4, (out_features,), jnp.float32, -bound2, bound2)

    # BatchNorm1d params + deterministic (synthetic) running stats.
    g1 = jnp.ones((hidden,), jnp.float32)
    be1 = jnp.zeros((hidden,), jnp.float32)
    rm1 = 0.01 * jnp.arange(hidden, dtype=jnp.float32)
    rv1 = 1.0 + 0.1 * jnp.arange(hidden, dtype=jnp.float32)

    g2 = jnp.ones((out_features,), jnp.float32)
    be2 = jnp.zeros((out_features,), jnp.float32)
    rm2 = 0.02 * jnp.arange(out_features, dtype=jnp.float32)
    rv2 = 1.0 + 0.05 * jnp.arange(out_features, dtype=jnp.float32)

    return (w1, b1, g1, be1, rm1, rv1, w2, b2, g2, be2, rm2, rv2)


def fold_and_pad_params(raw, eps=1e-5, lane=128):
    """Fold eval-mode BatchNorm into the linear layers; zero-pad the hidden and
    output feature dims of the (VMEM-resident) weights to 128 lanes.  Weights
    -> bf16 (MXU operands), biases stay f32 (VPU math)."""
    (w1, b1, g1, be1, rm1, rv1, w2, b2, g2, be2, rm2, rv2) = raw
    hidden = w1.shape[1]
    out_features = w2.shape[1]

    s1 = g1 / jnp.sqrt(rv1 + eps)
    t1 = be1 - rm1 * s1
    w1f = w1 * s1[None, :]
    b1f = b1 * s1 + t1

    s2 = g2 / jnp.sqrt(rv2 + eps)
    t2 = be2 - rm2 * s2
    w2f = w2 * s2[None, :]
    b2f = b2 * s2 + t2

    h_pad = _round_up(hidden, lane)
    o_pad = _round_up(out_features, lane)

    w1p = jnp.zeros((w1.shape[0], h_pad), jnp.float32).at[:, :hidden].set(w1f)
    b1p = jnp.zeros((1, h_pad), jnp.float32).at[:, :hidden].set(b1f)
    w2p = jnp.zeros((h_pad, o_pad), jnp.float32).at[:hidden, :out_features].set(w2f)
    b2p = jnp.zeros((1, o_pad), jnp.float32).at[:, :out_features].set(b2f)

    return (w1p.astype(jnp.bfloat16), b1p, w2p.astype(jnp.bfloat16), b2p)


def reference_forward_f32(x, raw, eps=1e-5):
    """Pure-JAX f32 eval-mode forward of the original module (no folding)."""
    (w1, b1, g1, be1, rm1, rv1, w2, b2, g2, be2, rm2, rv2) = raw
    h = x @ w1 + b1
    h = (h - rm1) / jnp.sqrt(rv1 + eps) * g1 + be1
    h = jnp.maximum(h, 0.0)
    z = h @ w2 + b2
    z = (z - rm2) / jnp.sqrt(rv2 + eps) * g2 + be2
    return jnp.maximum(z, 0.0)


def reference_forward_folded(x, folded_params, out_features):
    """Pure-JAX mirror of the kernel numerics (folded BN, bf16 matmul operands)."""
    w1, b1, w2, b2 = folded_params
    h = jnp.dot(x.astype(jnp.bfloat16), w1, preferred_element_type=jnp.float32) + b1
    h = jnp.maximum(h, 0.0)
    z = jnp.dot(h.astype(jnp.bfloat16), w2, preferred_element_type=jnp.float32) + b2
    return jnp.maximum(z, 0.0)[:, :out_features]


if __name__ == "__main__":
    B = 64
    in_features = 64
    out_features = 16

    key = jax.random.PRNGKey(0)
    kx, kp = jax.random.split(key)
    x = jax.random.normal(kx, (B, in_features), jnp.float32)

    raw = init_raw_params(kp, in_features, out_features)
    folded = fold_and_pad_params(raw)

    # Small demo batch still exercises a 2-step grid (tb = 32, grid = 2);
    # at real serving batches the default block_b=2048 gives large tiles.
    out = classifier_forward(x, folded, out_features)
    out = jax.block_until_ready(out)
    assert out.shape == (B, out_features)

    # Tight check vs a pure-JAX mirror of the kernel numerics.
    ref = reference_forward_folded(x, folded, out_features)
    assert jnp.allclose(out, ref, atol=1e-3, rtol=1e-3), "mismatch vs folded reference"

    # Loose sanity check vs the original f32 eval-mode module (tolerance covers
    # bf16 rounding of the matmul operands).
    ref32 = reference_forward_f32(x, raw)
    assert jnp.allclose(out, ref32, atol=1e-1, rtol=1e-1), "mismatch vs f32 reference"

    print("KERNEL_OK")
</pallas_src>

<mosaic_0001>
module attributes {stable_mosaic.version = 11 : i64} {
  func.func @_classifier_kernel(%arg0: i32, %arg1: memref<32x64xf32, #tpu.memory_space<vmem>>, %arg2: memref<64x128xbf16, #tpu.memory_space<vmem>>, %arg3: memref<1x128xf32, #tpu.memory_space<vmem>>, %arg4: memref<128x128xbf16, #tpu.memory_space<vmem>>, %arg5: memref<1x128xf32, #tpu.memory_space<vmem>>, %arg6: memref<32x16xf32, #tpu.memory_space<vmem>>) attributes {dimension_semantics = [#tpu.dimension_semantics<parallel>], iteration_bounds = array<i64: 2>, scalar_prefetch = 0 : i64, scratch_operands = 0 : i64, tpu.core_type = #tpu.core_type<tc>, window_params = [{transform_indices = @transform_0, window_bounds = array<i64: 32, 64>}, {pipeline_mode = #tpu.pipeline_mode<synchronous>, transform_indices = @transform_1, window_bounds = array<i64: 64, 128>}, {pipeline_mode = #tpu.pipeline_mode<synchronous>, transform_indices = @transform_2, window_bounds = array<i64: 1, 128>}, {pipeline_mode = #tpu.pipeline_mode<synchronous>, transform_indices = @transform_3, window_bounds = array<i64: 128, 128>}, {pipeline_mode = #tpu.pipeline_mode<synchronous>, transform_indices = @transform_4, window_bounds = array<i64: 1, 128>}, {transform_indices = @transform_5, window_bounds = array<i64: 32, 16>}]} {
    %c0 = arith.constant 0 : index
    %c0_0 = arith.constant 0 : index
    %0 = vector.load %arg1[%c0, %c0_0] : memref<32x64xf32, #tpu.memory_space<vmem>>, vector<32x64xf32>
    %1 = arith.truncf %0 : vector<32x64xf32> to vector<32x64xbf16>
    %c0_1 = arith.constant 0 : index
    %c0_2 = arith.constant 0 : index
    %2 = vector.load %arg2[%c0_1, %c0_2] : memref<64x128xbf16, #tpu.memory_space<vmem>>, vector<64x128xbf16>
    %cst = arith.constant dense<0.000000e+00> : vector<32x128xf32>
    %3 = tpu.matmul %1, %2, %cst {dimension_numbers = #tpu.dot_dimension_numbers<[1], [0], [0], [1], [0, 0, 1, 1], [], []>} : vector<32x64xbf16>, vector<64x128xbf16>, vector<32x128xf32> -> vector<32x128xf32>
    %c0_3 = arith.constant 0 : index
    %c0_4 = arith.constant 0 : index
    %4 = vector.load %arg3[%c0_3, %c0_4] : memref<1x128xf32, #tpu.memory_space<vmem>>, vector<1x128xf32>
    %5 = vector.broadcast %4 : vector<1x128xf32> to vector<32x128xf32>
    %6 = arith.addf %3, %5 : vector<32x128xf32>
    %cst_5 = arith.constant 0.000000e+00 : f32
    %7 = vector.broadcast %cst_5 : f32 to vector<32x128xf32>
    %8 = arith.maximumf %6, %7 : vector<32x128xf32>
    %9 = arith.truncf %8 : vector<32x128xf32> to vector<32x128xbf16>
    %c0_6 = arith.constant 0 : index
    %c0_7 = arith.constant 0 : index
    %10 = vector.load %arg4[%c0_6, %c0_7] : memref<128x128xbf16, #tpu.memory_space<vmem>>, vector<128x128xbf16>
    %cst_8 = arith.constant dense<0.000000e+00> : vector<32x128xf32>
    %11 = tpu.matmul %9, %10, %cst_8 {dimension_numbers = #tpu.dot_dimension_numbers<[1], [0], [0], [1], [0, 0, 1, 1], [], []>} : vector<32x128xbf16>, vector<128x128xbf16>, vector<32x128xf32> -> vector<32x128xf32>
    %c0_9 = arith.constant 0 : index
    %c0_10 = arith.constant 0 : index
    %12 = vector.load %arg5[%c0_9, %c0_10] : memref<1x128xf32, #tpu.memory_space<vmem>>, vector<1x128xf32>
    %13 = vector.broadcast %12 : vector<1x128xf32> to vector<32x128xf32>
    %14 = arith.addf %11, %13 : vector<32x128xf32>
    %cst_11 = arith.constant 0.000000e+00 : f32
    %15 = vector.broadcast %cst_11 : f32 to vector<32x128xf32>
    %16 = arith.maximumf %14, %15 : vector<32x128xf32>
    %17 = vector.extract_strided_slice %16 {offsets = [0, 0], sizes = [32, 16], strides = [1, 1]} : vector<32x128xf32> to vector<32x16xf32>
    %c0_12 = arith.constant 0 : index
    %c0_13 = arith.constant 0 : index
    %18 = vector.load %arg6[%c0_12, %c0_13] : memref<32x16xf32, #tpu.memory_space<vmem>>, vector<32x16xf32>
    tpu.vector_store %arg6[%c0_12, %c0_13], %17 {strides = array<i32>} : memref<32x16xf32, #tpu.memory_space<vmem>>, vector<32x16xf32>,
    return
  }
  func.func @transform_0(%arg0: i32) -> (i32, i32) {
    %c0_i32 = arith.constant 0 : i32
    %c0_i32_0 = arith.constant 0 : i32
    return %arg0, %c0_i32 : i32, i32
  }
  func.func @transform_1(%arg0: i32) -> (i32, i32) {
    %c0_i32 = arith.constant 0 : i32
    %c0_i32_0 = arith.constant 0 : i32
    %c0_i32_1 = arith.constant 0 : i32
    return %c0_i32, %c0_i32_0 : i32, i32
  }
  func.func @transform_2(%arg0: i32) -> (i32, i32) {
    %c0_i32 = arith.constant 0 : i32
    %c0_i32_0 = arith.constant 0 : i32
    %c0_i32_1 = arith.constant 0 : i32
    return %c0_i32, %c0_i32_0 : i32, i32
  }
  func.func @transform_3(%arg0: i32) -> (i32, i32) {
    %c0_i32 = arith.constant 0 : i32
    %c0_i32_0 = arith.constant 0 : i32
    %c0_i32_1 = arith.constant 0 : i32
    return %c0_i32, %c0_i32_0 : i32, i32
  }
  func.func @transform_4(%arg0: i32) -> (i32, i32) {
    %c0_i32 = arith.constant 0 : i32
    %c0_i32_0 = arith.constant 0 : i32
    %c0_i32_1 = arith.constant 0 : i32
    return %c0_i32, %c0_i32_0 : i32, i32
  }
  func.func @transform_5(%arg0: i32) -> (i32, i32) {
    %c0_i32 = arith.constant 0 : i32
    %c0_i32_0 = arith.constant 0 : i32
    return %arg0, %c0_i32 : i32, i32
  }
}

</mosaic_0001>

<llo_original>
// kernel: tpu_custom_call.1
$region0: #{tpu_custom_call.1}
  #allocation0 [shape = 'u32[]', space=smem, size = 0x4, offset = 0x4, fixed_abs, tag = 'smem constant byte address 0x4 - core index']
  #allocation1 [shape = 'u32[72,128]{1,0:T(1,128)}', space=vmem, size = 0x9000, scoped, tag = 'internal scratch']
  %s0 = inlined_call_operand.hbm [shape: f32[64,64], index: 0, kind: input, shape index: {}]
  %s1 = inlined_call_operand.hbm [shape: bf16[64,128], index: 1, kind: input, shape index: {}]
  %s2 = inlined_call_operand.vmem [shape: f32[1,128], index: 2, kind: input, shape index: {}]
  %s3 = inlined_call_operand.hbm [shape: bf16[128,128], index: 3, kind: input, shape index: {}]
  %s4 = inlined_call_operand.vmem [shape: f32[1,128], index: 4, kind: input, shape index: {}]
  %s5 = inlined_call_operand.vmem [shape: f32[64,16], index: 5, kind: output, shape index: {}]
  %s6 = sld [smem:[#allocation0]]
  $region65: #{tpu_custom_call.1} parent=0
    _
  %s8 = ssub.s32 1, %s6
  %s9 = scalar_select 0, %s8, %s6
  $region1: #{tpu_custom_call.1} parent=0
    #allocation2 [shape = 'u8[32768]{0}', space=vmem, size = 0x8000, scoped, tag = 'input window, operand 0']
    #allocation3 [shape = 's32[2]{0}', space=sflag, size = 0x8, scoped, tag = 'scoped memory for tpu_custom_call.1']
    #allocation4 [shape = 'u8[16384]{0}', space=vmem, size = 0x4000, scoped, tag = 'input window, operand 1, single buffered']
    #allocation5 [shape = 's32[1]{0}', space=sflag, size = 0x4, scoped, tag = 'scoped memory for tpu_custom_call.1']
    #allocation6 [shape = 'u8[32768]{0}', space=vmem, size = 0x8000, scoped, tag = 'input window, operand 3, single buffered']
    %10 = vsyncpa [#allocation3], 0
    %s11 = scalar_lea.sflag [#allocation3], 1
    %12 = vsyncpa %s11, 0
    %13 = vsyncpa [#allocation5], 0
    loop: start=0, step=1, limit=4
    $region2: #{tpu_custom_call.1} parent=1 // loop_pre_header
      _
    $region3: #{tpu_custom_call.1} parent=1 // loop_header
      %s15 = sphi 0, %s19
      %p16 = scmp.ge.s32.totalorder %s15, 4
      %s25 = sphi 0, %s27
      %s28 = sphi 0, %s25
      %s29 = sphi 0, %s28
      %s45 = sphi 0, %s29
      %s49 = sphi 0, %s49
      %s51 = sphi 0, %s49
      %s52 = sphi 0, %s51
      %s66 = sphi 0, %s52
      %s70 = sphi 0, %s70
      %s72 = sphi 0, %s70
      %s73 = sphi 0, %s72
      %s87 = sphi 0, %s73
      %s91 = sphi 0, %s91
      %s93 = sphi 0, %s91
      %s94 = sphi 0, %s93
      %s108 = sphi 0, %s94
      %s112 = sphi 0, %s112
      %s114 = sphi 0, %s112
      %s115 = sphi 0, %s114
      %s129 = sphi 0, %s115
      %s135 = sphi 0, %s137
      %s138 = sphi 0, %s135
      %s139 = sphi 0, %s138
      %s155 = sphi 0, %s139
    $region4: #{tpu_custom_call.1} parent=1 // loop_header_branch
      %18 = sbr.rel (%p16) target = $region8
    $region5: #{tpu_custom_call.1} parent=1 // loop_body
      %s20 = ssub.s32 %s15, 1
      %s21 = ssub.s32 %s15, 2
      %s22 = sadd.s32 %s15, 1
      %s23 = ssub.s32 %s15, %s22
      %p24 = scmp.eq.s32.totalorder %s23, 0
      %s26 = sadd.s32 %s25, 1
      %s27 = scalar_select %p24, %s25, %s26
      %p30 = pneg %p24
      %p31 = scmp.eq.s32.totalorder %s15, 1
      %p32 = por %p30, %p31
      %p33 = scmp.ne.s32.totalorder %s25, %s28
      %p34 = scmp.eq.s32.totalorder %s15, 0
      %p35 = por %p33, %p34
      %p36 = scmp.ne.s32.totalorder %s25, %s28
      %p37 = scmp.eq.s32.totalorder %s20, 1
      %p38 = por %p36, %p37
      %p39 = scmp.ne.s32.totalorder %s28, %s29
      %p40 = scmp.eq.s32.totalorder %s20, 0
      %p41 = por %p39, %p40
      %p42 = scmp.ne.s32.totalorder %s28, %s29
      %p43 = scmp.eq.s32.totalorder %s21, 1
      %p44 = por %p42, %p43
      %p46 = scmp.ne.s32.totalorder %s29, %s45
      %p47 = scmp.eq.s32.totalorder %s21, 0
      %p48 = por %p46, %p47
      %s50 = sadd.s32 %s49, 1
      %p53 = scmp.eq.s32.totalorder %s15, 1
      %p54 = scmp.ne.s32.totalorder %s49, %s51
      %p55 = scmp.eq.s32.totalorder %s15, 0
      %p56 = por %p54, %p55
      %p57 = scmp.ne.s32.totalorder %s49, %s51
      %p58 = scmp.eq.s32.totalorder %s20, 1
      %p59 = por %p57, %p58
      %p60 = scmp.ne.s32.totalorder %s51, %s52
      %p61 = scmp.eq.s32.totalorder %s20, 0
      %p62 = por %p60, %p61
      %p63 = scmp.ne.s32.totalorder %s51, %s52
      %p64 = scmp.eq.s32.totalorder %s21, 1
      %p65 = por %p63, %p64
      %p67 = scmp.ne.s32.totalorder %s52, %s66
      %p68 = scmp.eq.s32.totalorder %s21, 0
      %p69 = por %p67, %p68
      %s71 = sadd.s32 %s70, 1
      %p74 = scmp.eq.s32.totalorder %s15, 1
      %p75 = scmp.ne.s32.totalorder %s70, %s72
      %p76 = scmp.eq.s32.totalorder %s15, 0
      %p77 = por %p75, %p76
      %p78 = scmp.ne.s32.totalorder %s70, %s72
      %p79 = scmp.eq.s32.totalorder %s20, 1
      %p80 = por %p78, %p79
      %p81 = scmp.ne.s32.totalorder %s72, %s73
      %p82 = scmp.eq.s32.totalorder %s20, 0
      %p83 = por %p81, %p82
      %p84 = scmp.ne.s32.totalorder %s72, %s73
      %p85 = scmp.eq.s32.totalorder %s21, 1
      %p86 = por %p84, %p85
      %p88 = scmp.ne.s32.totalorder %s73, %s87
      %p89 = scmp.eq.s32.totalorder %s21, 0
      %p90 = por %p88, %p89
      %s92 = sadd.s32 %s91, 1
      %p95 = scmp.eq.s32.totalorder %s15, 1
      %p96 = scmp.ne.s32.totalorder %s91, %s93
      %p97 = scmp.eq.s32.totalorder %s15, 0
      %p98 = por %p96, %p97
      %p99 = scmp.ne.s32.totalorder %s91, %s93
      %p100 = scmp.eq.s32.totalorder %s20, 1
      %p101 = por %p99, %p100
      %p102 = scmp.ne.s32.totalorder %s93, %s94
      %p103 = scmp.eq.s32.totalorder %s20, 0
      %p104 = por %p102, %p103
      %p105 = scmp.ne.s32.totalorder %s93, %s94
      %p106 = scmp.eq.s32.totalorder %s21, 1
      %p107 = por %p105, %p106
      %p109 = scmp.ne.s32.totalorder %s94, %s108
      %p110 = scmp.eq.s32.totalorder %s21, 0
      %p111 = por %p109, %p110
      %s113 = sadd.s32 %s112, 1
      %p116 = scmp.eq.s32.totalorder %s15, 1
      %p117 = scmp.ne.s32.totalorder %s112, %s114
      %p118 = scmp.eq.s32.totalorder %s15, 0
      %p119 = por %p117, %p118
      %p120 = scmp.ne.s32.totalorder %s112, %s114
      %p121 = scmp.eq.s32.totalorder %s20, 1
      %p122 = por %p120, %p121
      %p123 = scmp.ne.s32.totalorder %s114, %s115
      %p124 = scmp.eq.s32.totalorder %s20, 0
      %p125 = por %p123, %p124
      %p126 = scmp.ne.s32.totalorder %s114, %s115
      %p127 = scmp.eq.s32.totalorder %s21, 1
      %p128 = por %p126, %p127
      %p130 = scmp.ne.s32.totalorder %s115, %s129
      %p131 = scmp.eq.s32.totalorder %s21, 0
      %p132 = por %p130, %p131
      %s133 = ssub.s32 %s15, %s22
      %p134 = scmp.eq.s32.totalorder %s133, 0
      %s136 = sadd.s32 %s135, 1
      %s137 = scalar_select %p134, %s135, %s136
      %p140 = pneg %p134
      %p141 = scmp.eq.s32.totalorder %s15, 1
      %p142 = por %p140, %p141
      %p143 = scmp.ne.s32.totalorder %s135, %s138
      %p144 = scmp.eq.s32.totalorder %s15, 0
      %p145 = por %p143, %p144
      %p146 = scmp.ne.s32.totalorder %s135, %s138
      %p147 = scmp.eq.s32.totalorder %s20, 1
      %p148 = por %p146, %p147
      %p149 = scmp.ne.s32.totalorder %s138, %s139
      %p150 = scmp.eq.s32.totalorder %s20, 0
      %p151 = por %p149, %p150
      %p152 = scmp.ne.s32.totalorder %s138, %s139
      %p153 = scmp.eq.s32.totalorder %s21, 1
      %p154 = por %p152, %p153
      %p156 = scmp.ne.s32.totalorder %s139, %s155
      %p157 = scmp.eq.s32.totalorder %s21, 0
      %p158 = por %p156, %p157
      %p159 = scmp.le.s32.totalorder 1, %s15
      %p160 = scmp.lt.s32.totalorder %s15, 3
      %p161 = pnand %p159, %p160
      %p162 = pneg %p161
      // Predicated region
      $region9: #{tpu_custom_call.1} parent=5 // pred_check
        _
      $region10: #{tpu_custom_call.1} parent=5 // pred_check_branch
        %164 = sbr.rel (%p161) target = $region12
      $region11: #{tpu_custom_call.1} parent=5 // pred_region
        %s165 = ssub.s32 %s15, 1
        // Predicated region
        $region13: #{tpu_custom_call.1} parent=11 // pred_check
          %p166 = pneg %p62
        $region14: #{tpu_custom_call.1} parent=11 // pred_check_branch
          %168 = sbr.rel (%p166) target = $region16
        $region15: #{tpu_custom_call.1} parent=11 // pred_region
          %170 = vsyncadd [#allocation5], 0
          %s171 = sshll.u32 %s1, 4
          %s172 = int_to_ptr.hbm [resolvable:$true] %s171
          %s173 = sshll.u32 [#allocation4], 4
          %s174 = int_to_ptr.vmem [resolvable:$true] %s173
          %179 = dma.hbm_to_vmem [thread:$0]  %s172, 512, %s174, [#allocation5], 64, 64, 4
        $region16: #{tpu_custom_call.1} parent=11 // pred_fallthru
          _
        // Predicated region
        $region17: #{tpu_custom_call.1} parent=11 // pred_check
          %p180 = pneg %p83
        $region18: #{tpu_custom_call.1} parent=11 // pred_check_branch
          %182 = sbr.rel (%p180) target = $region20
        $region19: #{tpu_custom_call.1} parent=11 // pred_region
          _
        $region20: #{tpu_custom_call.1} parent=11 // pred_fallthru
          _
        // Predicated region
        $region21: #{tpu_custom_call.1} parent=11 // pred_check
          %p183 = pneg %p104
        $region22: #{tpu_custom_call.1} parent=11 // pred_check_branch
          %185 = sbr.rel (%p183) target = $region24
        $region23: #{tpu_custom_call.1} parent=11 // pred_region
          %187 = vsyncadd [#allocation5], 0
          %s188 = sshll.u32 %s3, 4
          %s189 = int_to_ptr.hbm [resolvable:$true] %s188
          %s190 = sshll.u32 [#allocation6], 4
          %s191 = int_to_ptr.vmem [resolvable:$true] %s190
          %196 = dma.hbm_to_vmem [thread:$0]  %s189, 1024, %s191, [#allocation5], 64, 64, 4
        $region24: #{tpu_custom_call.1} parent=11 // pred_fallthru
          _
        // Predicated region
        $region25: #{tpu_custom_call.1} parent=11 // pred_check
          %p197 = pneg %p125
        $region26: #{tpu_custom_call.1} parent=11 // pred_check_branch
          %199 = sbr.rel (%p197) target = $region28
        $region27: #{tpu_custom_call.1} parent=11 // pred_region
          _
        $region28: #{tpu_custom_call.1} parent=11 // pred_fallthru
          _
      $region12: #{tpu_custom_call.1} parent=5 // pred_fallthru
        _
      %p200 = scmp.lt.s32.totalorder %s15, 2
      // Predicated region
      $region29: #{tpu_custom_call.1} parent=5 // pred_check
        %p201 = pneg %p200
      $region30: #{tpu_custom_call.1} parent=5 // pred_check_branch
        %203 = sbr.rel (%p201) target = $region32
      $region31: #{tpu_custom_call.1} parent=5 // pred_region
        // Predicated region
        $region33: #{tpu_custom_call.1} parent=31 // pred_check
          %p204 = pneg %p35
        $region34: #{tpu_custom_call.1} parent=31 // pred_check_branch
          %206 = sbr.rel (%p204) target = $region36
        $region35: #{tpu_custom_call.1} parent=31 // pred_region
          %s207 = sand.u32 %s25, 1
          %s208 = scalar_lea.sflag [#allocation3], %s207
          %s209 = sand.u32 %s25, 1
          %s210 = smul.addr %s209, 32
          %s211 = scalar_lea.vmem [#allocation2], %s210
          %s212 = smul.u32 4, %s15
          %214 = vsyncadd %s208, 0
          %s215 = smul.addr %s212, 8
          %s216 = scalar_lea.hbm %s0, %s215
          %s217 = sshll.u32 %s216, 4
          %s218 = int_to_ptr.hbm [resolvable:$true] %s217
          %s219 = sshll.u32 %s211, 4
          %s220 = int_to_ptr.vmem [resolvable:$true] %s219
          %225 = dma.hbm_to_vmem [thread:$0]  %s218, 512, %s220, %s208, 128, 128, 8
        $region36: #{tpu_custom_call.1} parent=31 // pred_fallthru
          _
      $region32: #{tpu_custom_call.1} parent=5 // pred_fallthru
        _
      %p226 = scmp.le.s32.totalorder 1, %s15
      %p227 = scmp.lt.s32.totalorder %s15, 3
      %p228 = pnand %p226, %p227
      %p229 = pneg %p228
      // Predicated region
      $region37: #{tpu_custom_call.1} parent=5 // pred_check
        _
      $region38: #{tpu_custom_call.1} parent=5 // pred_check_branch
        %231 = sbr.rel (%p228) target = $region40
      $region39: #{tpu_custom_call.1} parent=5 // pred_region
        %s232 = ssub.s32 %s15, 1
        %s233 = sand.u32 %s28, 1
        %s234 = scalar_lea.sflag [#allocation3], %s233
        %s235 = sand.u32 %s28, 1
        %s236 = smul.addr %s235, 32
        %s237 = scalar_lea.vmem [#allocation2], %s236
        // Predicated region
        $region41: #{tpu_custom_call.1} parent=39 // pred_check
          %p238 = pneg %p41
        $region42: #{tpu_custom_call.1} parent=39 // pred_check_branch
          %240 = sbr.rel (%p238) target = $region44
        $region43: #{tpu_custom_call.1} parent=39 // pred_region
          %242 = dma.done %s234, 512
        $region44: #{tpu_custom_call.1} parent=39 // pred_fallthru
          _
        // Predicated region
        $region45: #{tpu_custom_call.1} parent=39 // pred_check
          %p243 = pneg %p62
        $region46: #{tpu_custom_call.1} parent=39 // pred_check_branch
          %245 = sbr.rel (%p243) target = $region48
        $region47: #{tpu_custom_call.1} parent=39 // pred_region
          %247 = dma.done [#allocation5], 512
        $region48: #{tpu_custom_call.1} parent=39 // pred_fallthru
          _
        // Predicated region
        $region49: #{tpu_custom_call.1} parent=39 // pred_check
          %p248 = pneg %p104
        $region50: #{tpu_custom_call.1} parent=39 // pred_check_branch
          %250 = sbr.rel (%p248) target = $region52
        $region51: #{tpu_custom_call.1} parent=39 // pred_region
          %252 = dma.done [#allocation5], 1024
        $region52: #{tpu_custom_call.1} parent=39 // pred_fallthru
          _
        %s253 = sand.u32 %s28, 1
        %s254 = scalar_lea.sflag [#allocation3], %s253
        %s255 = sand.u32 %s28, 1
        %s256 = smul.addr %s255, 32
        %s257 = scalar_lea.vmem [#allocation2], %s256
        %p258 = pneg %p41
        %p259 = pneg %p38
        %p260 = pneg %p62
        %p261 = pneg %p59
        %p262 = pneg %p83
        %p263 = pneg %p80
        %p264 = pneg %p104
        %p265 = pneg %p101
        %p266 = pneg %p125
        %p267 = pneg %p122
        %p268 = pneg %p151
        %p269 = pneg %p148
        %s270 = smul.u32 4, %s20
        %p271 = scmp.lt.s32.totalorder %s270, 7
        %s272 = scalar_select %p271, %s270, 7
        %s273 = smul.addr %s272, 8
        %s274 = scalar_lea.vmem %s5, %s273
        %s275 = smul.u32 4, %s20
        %s276 = smul.u32 4, %s20
        %p277 = scmp.lt.s32.totalorder %s276, 7
        %s278 = scalar_select %p277, %s276, 7
        %s279 = smul.addr %s278, 8
        %s280 = scalar_lea.vmem %s5, %s279
        %s281 = smul.u32 4, %s20
        %v283 = vld [vmem:[%s237] sm:$0xff]
        %v284 = vld [vmem:[%s237 + $0x8] sm:$0xff]
        %v285 = vld [vmem:[%s237 + $0x10] sm:$0xff]
        %v286 = vld [vmem:[%s237 + $0x18] sm:$0xff]
        %v287 = vpack.c.bf16 %v284, %v283
        %v288 = vpack.c.bf16 %v286, %v285
        %v289 = vld [vmem:[#allocation4] sm:$0xf]
        %v290 = vld [vmem:[#allocation4 + $0x4] sm:$0xf]
        %v291 = vld [vmem:[#allocation4 + $0x8] sm:$0xf]
        %v292 = vld [vmem:[#allocation4 + $0xc] sm:$0xf]
        %v293 = vld [vmem:[#allocation4 + $0x10] sm:$0xf]
        %v294 = vld [vmem:[#allocation4 + $0x14] sm:$0xf]
        %v295 = vld [vmem:[#allocation4 + $0x18] sm:$0xf]
        %v296 = vld [vmem:[#allocation4 + $0x1c] sm:$0xf]
        %v297 = vld [vmem:[%s2] sm:$0x1]
        %v299 = vperm.slane %v297, 0
        %v309 = vunpack.c.l.b16 %v289
        %v310 = vunpack.c.l.b16 %v290
        %v311 = vunpack.c.l.b16 %v291
        %v312 = vunpack.c.l.b16 %v292
        %v313 = vunpack.c.l.b16 %v293
        %v314 = vunpack.c.l.b16 %v294
        %v315 = vunpack.c.l.b16 %v295
        %v316 = vunpack.c.l.b16 %v296
        %v317 = vpack.c.b16 %v310, %v309
        %v318 = vpack.c.b16 %v312, %v311
        %v319 = vpack.c.b16 %v314, %v313
        %v320 = vpack.c.b16 %v316, %v315
        %vm325 = vcmask 523264
        %v327 = vsel %vm325, %v287, 0
        %v330 = vsel %vm325, %v288, 0
        %332 = vmatpush.bf16.msra.mxu0 0
        %333 = vmatpush.bf16.msra.mxu0 0
        %334 = vmatpush.bf16.msra.mxu0 0
        %335 = vmatpush.bf16.msra.mxu0 0
        %336 = vmatpush.bf16.msra.mxu0 %v320
        %337 = vmatpush.bf16.msra.mxu0 %v319
        %338 = vmatpush.bf16.msra.mxu0 %v318
        %339 = vmatpush.bf16.msra.mxu0 %v317
        %340 = vmatmul.bf16.gmra.mxu0 %v327
        %v341 = vpop.f32.mrf.mxu0
        %v342 = vadd.f32 %v299, %v341
        %v343 = vpop.f32.mrf.mxu0
        %v344 = vadd.f32 %v299, %v343
        %345 = vmatmul.bf16.gmra.mxu0 %v330
        %v346 = vpop.f32.mrf.mxu0
        %v347 = vadd.f32 %v299, %v346
        %v348 = vpop.f32.mrf.mxu0
        %v349 = vadd.f32 %v299, %v348
        %350 = vdwg.mxu0
        %v351 = vmax.f32 %v342, 0.0
        %v352 = vmax.f32 %v344, 0.0
        %v353 = vmax.f32 %v347, 0.0
        %v354 = vmax.f32 %v349, 0.0
        %v355 = vpack.c.bf16 %v352, %v351
        %v356 = vpack.c.bf16 %v354, %v353
        %v357 = vld [vmem:[#allocation6] sm:$0xf]
        %v358 = vld [vmem:[#allocation6 + $0x4] sm:$0xf]
        %v359 = vld [vmem:[#allocation6 + $0x8] sm:$0xf]
        %v360 = vld [vmem:[#allocation6 + $0xc] sm:$0xf]
        %v361 = vld [vmem:[#allocation6 + $0x10] sm:$0xf]
        %v362 = vld [vmem:[#allocation6 + $0x14] sm:$0xf]
        %v363 = vld [vmem:[#allocation6 + $0x18] sm:$0xf]
        %v364 = vld [vmem:[#allocation6 + $0x1c] sm:$0xf]
        %v365 = vld [vmem:[#allocation6 + $0x20] sm:$0xf]
        %v366 = vld [vmem:[#allocation6 + $0x24] sm:$0xf]
        %v367 = vld [vmem:[#allocation6 + $0x28] sm:$0xf]
        %v368 = vld [vmem:[#allocation6 + $0x2c] sm:$0xf]
        %v369 = vld [vmem:[#allocation6 + $0x30] sm:$0xf]
        %v370 = vld [vmem:[#allocation6 + $0x34] sm:$0xf]
        %v371 = vld [vmem:[#allocation6 + $0x38] sm:$0xf]
        %v372 = vld [vmem:[#allocation6 + $0x3c] sm:$0xf]
        %v373 = vld [vmem:[%s4] sm:$0x1]
        %v375 = vperm.slane %v373, 0
        %v393 = vunpack.c.l.b16 %v357
        %v394 = vunpack.c.l.b16 %v358
        %v395 = vunpack.c.l.b16 %v359
        %v396 = vunpack.c.l.b16 %v360
        %v397 = vunpack.c.l.b16 %v361
        %v398 = vunpack.c.l.b16 %v362
        %v399 = vunpack.c.l.b16 %v363
        %v400 = vunpack.c.l.b16 %v364
        %v401 = vunpack.c.l.b16 %v365
        %v402 = vunpack.c.l.b16 %v366
        %v403 = vunpack.c.l.b16 %v367
        %v404 = vunpack.c.l.b16 %v368
        %v405 = vunpack.c.l.b16 %v369
        %v406 = vunpack.c.l.b16 %v370
        %v407 = vunpack.c.l.b16 %v371
        %v408 = vunpack.c.l.b16 %v372
        %v409 = vpack.c.b16 %v394, %v393
        %v410 = vpack.c.b16 %v396, %v395
        %v411 = vpack.c.b16 %v398, %v397
        %v412 = vpack.c.b16 %v400, %v399
        %v413 = vpack.c.b16 %v402, %v401
        %v414 = vpack.c.b16 %v404, %v403
        %v415 = vpack.c.b16 %v406, %v405
        %v416 = vpack.c.b16 %v408, %v407
        %425 = vmatpush.bf16.msra.mxu0 %v416
        %426 = vmatpush.bf16.msra.mxu0 %v415
        %427 = vmatpush.bf16.msra.mxu0 %v414
        %428 = vmatpush.bf16.msra.mxu0 %v413
        %429 = vmatpush.bf16.msra.mxu0 %v412
        %430 = vmatpush.bf16.msra.mxu0 %v411
        %431 = vmatpush.bf16.msra.mxu0 %v410
        %432 = vmatpush.bf16.msra.mxu0 %v409
        %433 = vmatmul.bf16.gmra.mxu0 %v355
        %v434 = vpop.f32.mrf.mxu0
        %v435 = vadd.f32 %v375, %v434
        %v436 = vpop.f32.mrf.mxu0
        %v437 = vadd.f32 %v375, %v436
        %438 = vmatmul.bf16.gmra.mxu0 %v356
        %v439 = vpop.f32.mrf.mxu0
        %v440 = vadd.f32 %v375, %v439
        %v441 = vpop.f32.mrf.mxu0
        %v442 = vadd.f32 %v375, %v441
        %443 = vdwg.mxu0
        %v444 = vmax.f32 %v435, 0.0
        %v445 = vmax.f32 %v437, 0.0
        %v446 = vmax.f32 %v440, 0.0
        %v447 = vmax.f32 %v442, 0.0
        %vm448 = vcmask 130048
        %449 = vst.msk [vmem:[%s280] sm:$0xff] %vm448, %v444
        %450 = vst.msk [vmem:[%s280 + $0x8] sm:$0xff] %vm448, %v445
        %451 = vst.msk [vmem:[%s280 + $0x10] sm:$0xff] %vm448, %v446
        %452 = vst.msk [vmem:[%s280 + $0x18] sm:$0xff] %vm448, %v447
        %s453 = smul.u32 4, %s20
        %p454 = scmp.lt.s32.totalorder %s453, 7
        %s455 = scalar_select %p454, %s453, 7
        %s456 = smul.addr %s455, 8
        %s457 = scalar_lea.vmem %s5, %s456
        // Predicated region
        $region53: #{tpu_custom_call.1} parent=39 // pred_check
          %p458 = pneg %p148
        $region54: #{tpu_custom_call.1} parent=39 // pred_check_branch
          %460 = sbr.rel (%p458) target = $region56
        $region55: #{tpu_custom_call.1} parent=39 // pred_region
          %s461 = smul.u32 4, %s20
        $region56: #{tpu_custom_call.1} parent=39 // pred_fallthru
          _
      $region40: #{tpu_custom_call.1} parent=5 // pred_fallthru
        _
      %p462 = scmp.le.s32.totalorder 2, %s15
      // Predicated region
      $region57: #{tpu_custom_call.1} parent=5 // pred_check
        %p463 = pneg %p462
      $region58: #{tpu_custom_call.1} parent=5 // pred_check_branch
        %465 = sbr.rel (%p463) target = $region60
      $region59: #{tpu_custom_call.1} parent=5 // pred_region
        %s466 = ssub.s32 %s15, 2
        // Predicated region
        $region61: #{tpu_custom_call.1} parent=59 // pred_check
          %p467 = pneg %p154
        $region62: #{tpu_custom_call.1} parent=59 // pred_check_branch
          %469 = sbr.rel (%p467) target = $region64
        $region63: #{tpu_custom_call.1} parent=59 // pred_region
          %s470 = smul.u32 4, %s21
          %p471 = scmp.lt.s32.totalorder %s470, 7
          %s472 = scalar_select %p471, %s470, 7
          %s473 = smul.addr %s472, 8
          %s474 = scalar_lea.vmem %s5, %s473
        $region64: #{tpu_custom_call.1} parent=59 // pred_fallthru
          _
      $region60: #{tpu_custom_call.1} parent=5 // pred_fallthru
        _
    $region6: #{tpu_custom_call.1} parent=1 // loop_footer
      %s19 = sadd.s32 1, %s15
    $region7: #{tpu_custom_call.1} parent=1 // loop_footer_branch
      %14 = sbr.rel target = $region3
    $region8: #{tpu_custom_call.1} parent=1 // loop_exit
      _
    %475 = vsyncpa [#allocation3], 1
    %s476 = scalar_lea.sflag [#allocation3], 1
    %477 = vsyncpa %s476, 1
    %478 = vsyncpa [#allocation5], 1

</llo_original>
